<compile_context>
chip_gen: v7x
topology: tpu7x:2x2x1
jax: 0.10.0
libtpu: 0.0.40
codegen_flags: <defaults>
</compile_context>

<pallas_src>
import functools

import jax
import jax.numpy as jnp
from jax.experimental import pallas as pl
from jax.experimental.pallas import tpu as pltpu

LANE = 128     # vreg lane width: pad weight/output feature dims to this
SUBLANE = 8    # sublane grain: batch tiles must be a multiple of this


def _round_up(n, m):
    return ((n + m - 1) // m) * m


# --------------------------------------------------------------------------
# Kernel
# --------------------------------------------------------------------------
def mlp_kernel(x_ref, w1_ref, b1_ref, w2_ref, b2_ref, w3_ref, b3_ref, o_ref):
    # f32 -> bf16 cast on the VPU (rides under the MXU); weights are already
    # bf16 and VMEM-resident.  All dots accumulate in f32 on the MXU.
    x = x_ref[...].astype(jnp.bfloat16)
    h1 = jnp.dot(x, w1_ref[...], preferred_element_type=jnp.float32)
    h1 = jnp.maximum(h1 + b1_ref[...], 0.0)
    h2 = jnp.dot(h1.astype(jnp.bfloat16), w2_ref[...],
                 preferred_element_type=jnp.float32)
    h2 = jnp.maximum(h2 + b2_ref[...], 0.0)
    out = jnp.dot(h2.astype(jnp.bfloat16), w3_ref[...],
                  preferred_element_type=jnp.float32)
    o_ref[...] = (out + b3_ref[...]).astype(o_ref.dtype)


# --------------------------------------------------------------------------
# One-time parameter preparation (pad + cast OUTSIDE the per-call forward)
# --------------------------------------------------------------------------
def _pad2d(a, rows, cols, dtype):
    out = jnp.zeros((rows, cols), dtype)
    return out.at[: a.shape[0], : a.shape[1]].set(a.astype(dtype))


def prepare_params(w1, b1, w2, b2, w3, b3):
    """Pad feature dims to the 128-lane grain and cast weights to bf16 once.

    Zero padding is mathematically neutral: padded weight rows contribute
    nothing to the contraction and padded output columns are sliced off.
    """
    in_f, hidden = w1.shape
    num_classes = w3.shape[1]
    h_p = _round_up(hidden, LANE)
    c_p = _round_up(num_classes, LANE)
    return dict(
        w1=_pad2d(w1, in_f, h_p, jnp.bfloat16),          # [in_f, h_p]
        b1=_pad2d(b1.reshape(1, -1), 1, h_p, jnp.float32),
        w2=_pad2d(w2, h_p, h_p, jnp.bfloat16),            # [h_p, h_p]
        b2=_pad2d(b2.reshape(1, -1), 1, h_p, jnp.float32),
        w3=_pad2d(w3, h_p, c_p, jnp.bfloat16),             # [h_p, c_p]
        b3=_pad2d(b3.reshape(1, -1), 1, c_p, jnp.float32),
        num_classes=num_classes,
    )


# --------------------------------------------------------------------------
# Per-chip budgets and tile selection
# --------------------------------------------------------------------------
def _chip_budget():
    """(scoped VMEM limit bytes, batch-tile cap) per TPU generation."""
    try:
        kind = jax.devices()[0].device_kind.lower()
    except Exception:  # pragma: no cover - defensive
        kind = ""
    if "v7" in kind:
        # v7x: 64 MiB physical VMEM per TensorCore -> stay well under it.
        return 48 * 1024 * 1024, 512
    # v5e / v6e: 128 MiB physical VMEM -> larger tiles amortize per-step cost.
    return 64 * 1024 * 1024, 1024


def _choose_tile_b(B, in_f, h_p, c_p, vmem_limit, tile_cap, tile_b, out_dtype):
    # Resident (single-buffered) bf16 weights + f32 biases.
    weight_bytes = 2 * (in_f * h_p + h_p * h_p + h_p * c_p) + 4 * (2 * h_p + c_p)
    if weight_bytes > vmem_limit // 2:
        # TODO(synk): add a K-tiled fallback (second 'arbitrary' grid axis over
        # the hidden/contraction dim + f32 VMEM accumulator with pl.when
        # init/finalize) for hidden sizes whose resident weights exceed VMEM.
        raise ValueError(
            f"Resident weights ({weight_bytes / 2**20:.1f} MiB) exceed half of "
            f"the scoped VMEM budget ({vmem_limit / 2**20:.1f} MiB); hidden "
            "size too large for the fully-resident-weight kernel.")

    out_bytes = jnp.dtype(out_dtype).itemsize

    def per_tile_bytes(tb):
        return tb * (
            2 * 4 * in_f              # x tile, f32, double-buffered
            + 2 * out_bytes * c_p     # out tile, double-buffered
            + 4 * (2 * h_p + c_p)     # f32 intermediates (h1, h2, out)
            + 2 * (in_f + 2 * h_p))   # bf16 casts

    if tile_b is None:
        # >= 2 grid steps whenever possible so the 'parallel' batch axis can
        # shard across v7x's two TensorCores; per-tile padding waste < 8 rows.
        n_tiles = max(pl.cdiv(B, tile_cap), 2 if B > SUBLANE else 1)
        tile_b = _round_up(pl.cdiv(B, n_tiles), SUBLANE)
    else:
        # Clamp user-supplied tile_b to the sublane grain.
        tile_b = max(SUBLANE, _round_up(int(tile_b), SUBLANE))

    # Shrink the batch tile if the total footprint approaches the budget.
    while tile_b > SUBLANE and weight_bytes + per_tile_bytes(tile_b) > (3 * vmem_limit) // 4:
        tile_b = _round_up(tile_b // 2, SUBLANE)
    return tile_b


# --------------------------------------------------------------------------
# pallas_call wrapper
# --------------------------------------------------------------------------
def _const_spec(shape, single_buffer):
    """BlockSpec for a VMEM-resident operand (constant index_map)."""
    if single_buffer:
        # Never changes across grid steps -> single buffer halves its VMEM use.
        return pl.BlockSpec(shape, lambda i: (0, 0), pipeline_mode=pl.Buffered(1))
    return pl.BlockSpec(shape, lambda i: (0, 0))


@functools.partial(
    jax.jit,
    static_argnames=("num_classes", "tile_b", "vmem_limit",
                     "single_buffer_weights", "out_dtype", "return_padded"))
def _forward_impl(x, w1, b1, w2, b2, w3, b3, *, num_classes, tile_b,
                  vmem_limit, single_buffer_weights, out_dtype, return_padded):
    B, in_f = x.shape
    h_p = w1.shape[1]
    c_p = w3.shape[1]
    grid = (pl.cdiv(B, tile_b),)   # partial last tile handled by masked stores

    out_p = pl.pallas_call(
        mlp_kernel,
        out_shape=jax.ShapeDtypeStruct((B, c_p), out_dtype),
        grid=grid,
        in_specs=[
            # x: tiled over the batch axis, read directly as f32 (cast in-kernel).
            # Last block dim == full array dim, so in_f need not be 128-aligned.
            pl.BlockSpec((tile_b, in_f), lambda i: (i, 0)),
            # Weights / biases: VMEM-resident across all grid steps.
            _const_spec((in_f, h_p), single_buffer_weights),
            _const_spec((1, h_p), single_buffer_weights),
            _const_spec((h_p, h_p), single_buffer_weights),
            _const_spec((1, h_p), single_buffer_weights),
            _const_spec((h_p, c_p), single_buffer_weights),
            _const_spec((1, c_p), single_buffer_weights),
        ],
        out_specs=pl.BlockSpec((tile_b, c_p), lambda i: (i, 0)),
        compiler_params=pltpu.CompilerParams(
            # Batch axis is embarrassingly parallel -> megacore-shard on v7x.
            dimension_semantics=("parallel",),
            vmem_limit_bytes=vmem_limit,
        ),
    )(x, w1, b1, w2, b2, w3, b3)

    if return_padded or c_p == num_classes:
        return out_p
    return out_p[:, :num_classes]


# Resolved on first call: whether this Pallas build accepts pl.Buffered(1).
_SINGLE_BUFFER_WEIGHTS = None


def neural_net_forward(x, params, *, tile_b=None, out_dtype=jnp.float32,
                       return_padded=False):
    """x: [B, in_f] f32, params: dict from prepare_params -> [B, num_classes]."""
    global _SINGLE_BUFFER_WEIGHTS

    B, in_f = x.shape
    h_p = params["w1"].shape[1]
    c_p = params["w3"].shape[1]
    num_classes = params["num_classes"]

    vmem_limit, tile_cap = _chip_budget()
    tile_b = _choose_tile_b(B, in_f, h_p, c_p, vmem_limit, tile_cap, tile_b,
                            out_dtype)

    args = (x, params["w1"], params["b1"], params["w2"], params["b2"],
            params["w3"], params["b3"])
    kwargs = dict(num_classes=num_classes, tile_b=tile_b,
                  vmem_limit=vmem_limit, out_dtype=out_dtype,
                  return_padded=return_padded)

    if _SINGLE_BUFFER_WEIGHTS is None:
        try:
            out = _forward_impl(*args, single_buffer_weights=True, **kwargs)
            _SINGLE_BUFFER_WEIGHTS = True
            return out
        except Exception:
            # pipeline_mode / Buffered not supported by this Pallas build:
            # fall back to default double-buffering (correctness unaffected).
            _SINGLE_BUFFER_WEIGHTS = False
    return _forward_impl(*args, single_buffer_weights=_SINGLE_BUFFER_WEIGHTS,
                         **kwargs)


# --------------------------------------------------------------------------
# Reference + init helpers
# --------------------------------------------------------------------------
def init_linear_params(key, in_features, out_features):
    """Deterministic init mimicking nn.Linear default (uniform +/- 1/sqrt(in))."""
    kw, kb = jax.random.split(key)
    bound = 1.0 / jnp.sqrt(jnp.float32(in_features))
    # Stored as [in, out] (transposed relative to PyTorch's [out, in]).
    w = jax.random.uniform(kw, (in_features, out_features), jnp.float32,
                           minval=-bound, maxval=bound)
    b = jax.random.uniform(kb, (1, out_features), jnp.float32,
                           minval=-bound, maxval=bound)
    return w, b


def ref_forward(x, w1, b1, w2, b2, w3, b3):
    """Pure-JAX reference mirroring the kernel's bf16-in / f32-accumulate math."""
    xb = x.astype(jnp.bfloat16)
    w1b, w2b, w3b = (w.astype(jnp.bfloat16) for w in (w1, w2, w3))
    h1 = jnp.maximum(
        jnp.dot(xb, w1b, preferred_element_type=jnp.float32) + b1, 0.0)
    h2 = jnp.maximum(
        jnp.dot(h1.astype(jnp.bfloat16), w2b,
                preferred_element_type=jnp.float32) + b2, 0.0)
    return jnp.dot(h2.astype(jnp.bfloat16), w3b,
                   preferred_element_type=jnp.float32) + b3


if __name__ == "__main__":
    # Small, module-consistent shapes.
    batch = 8
    input_size = 32
    hidden_size = 8
    num_classes = 4

    root = jax.random.PRNGKey(0)
    kx, k1, k2, k3 = jax.random.split(root, 4)

    x = jax.random.normal(kx, (batch, input_size), jnp.float32)
    w1, b1 = init_linear_params(k1, input_size, hidden_size)
    w2, b2 = init_linear_params(k2, hidden_size, hidden_size)
    w3, b3 = init_linear_params(k3, hidden_size, num_classes)

    params = prepare_params(w1, b1, w2, b2, w3, b3)   # one-time pad + bf16 cast
    out = neural_net_forward(x, params)
    out = jax.block_until_ready(out)

    ref = ref_forward(x, w1, b1, w2, b2, w3, b3)
    assert out.shape == (batch, num_classes)
    assert jnp.allclose(out, ref, atol=1e-2, rtol=1e-2), (
        f"max abs err = {jnp.max(jnp.abs(out - ref))}")

    print("KERNEL_OK")
</pallas_src>

<mosaic_0001>
module attributes {stable_mosaic.version = 11 : i64} {
  func.func @mlp_kernel(%arg0: i32, %arg1: memref<8x32xf32, #tpu.memory_space<vmem>>, %arg2: memref<32x128xbf16, #tpu.memory_space<vmem>>, %arg3: memref<1x128xf32, #tpu.memory_space<vmem>>, %arg4: memref<128x128xbf16, #tpu.memory_space<vmem>>, %arg5: memref<1x128xf32, #tpu.memory_space<vmem>>, %arg6: memref<128x128xbf16, #tpu.memory_space<vmem>>, %arg7: memref<1x128xf32, #tpu.memory_space<vmem>>, %arg8: memref<8x128xf32, #tpu.memory_space<vmem>>) attributes {dimension_semantics = [#tpu.dimension_semantics<parallel>], iteration_bounds = array<i64: 1>, scalar_prefetch = 0 : i64, scratch_operands = 0 : i64, tpu.core_type = #tpu.core_type<tc>, window_params = [{transform_indices = @transform_0, window_bounds = array<i64: 8, 32>}, {pipeline_mode = #tpu.pipeline_mode<synchronous>, transform_indices = @transform_1, window_bounds = array<i64: 32, 128>}, {pipeline_mode = #tpu.pipeline_mode<synchronous>, transform_indices = @transform_2, window_bounds = array<i64: 1, 128>}, {pipeline_mode = #tpu.pipeline_mode<synchronous>, transform_indices = @transform_3, window_bounds = array<i64: 128, 128>}, {pipeline_mode = #tpu.pipeline_mode<synchronous>, transform_indices = @transform_4, window_bounds = array<i64: 1, 128>}, {pipeline_mode = #tpu.pipeline_mode<synchronous>, transform_indices = @transform_5, window_bounds = array<i64: 128, 128>}, {pipeline_mode = #tpu.pipeline_mode<synchronous>, transform_indices = @transform_6, window_bounds = array<i64: 1, 128>}, {transform_indices = @transform_7, window_bounds = array<i64: 8, 128>}]} {
    %c0 = arith.constant 0 : index
    %c0_0 = arith.constant 0 : index
    %0 = vector.load %arg1[%c0, %c0_0] : memref<8x32xf32, #tpu.memory_space<vmem>>, vector<8x32xf32>
    %1 = arith.truncf %0 : vector<8x32xf32> to vector<8x32xbf16>
    %c0_1 = arith.constant 0 : index
    %c0_2 = arith.constant 0 : index
    %2 = vector.load %arg2[%c0_1, %c0_2] : memref<32x128xbf16, #tpu.memory_space<vmem>>, vector<32x128xbf16>
    %cst = arith.constant dense<0.000000e+00> : vector<8x128xf32>
    %3 = tpu.matmul %1, %2, %cst {dimension_numbers = #tpu.dot_dimension_numbers<[1], [0], [0], [1], [0, 0, 1, 1], [], []>} : vector<8x32xbf16>, vector<32x128xbf16>, vector<8x128xf32> -> vector<8x128xf32>
    %c0_3 = arith.constant 0 : index
    %c0_4 = arith.constant 0 : index
    %4 = vector.load %arg3[%c0_3, %c0_4] : memref<1x128xf32, #tpu.memory_space<vmem>>, vector<1x128xf32>
    %5 = vector.broadcast %4 : vector<1x128xf32> to vector<8x128xf32>
    %6 = arith.addf %3, %5 : vector<8x128xf32>
    %cst_5 = arith.constant 0.000000e+00 : f32
    %7 = vector.broadcast %cst_5 : f32 to vector<8x128xf32>
    %8 = arith.maximumf %6, %7 : vector<8x128xf32>
    %9 = arith.truncf %8 : vector<8x128xf32> to vector<8x128xbf16>
    %c0_6 = arith.constant 0 : index
    %c0_7 = arith.constant 0 : index
    %10 = vector.load %arg4[%c0_6, %c0_7] : memref<128x128xbf16, #tpu.memory_space<vmem>>, vector<128x128xbf16>
    %cst_8 = arith.constant dense<0.000000e+00> : vector<8x128xf32>
    %11 = tpu.matmul %9, %10, %cst_8 {dimension_numbers = #tpu.dot_dimension_numbers<[1], [0], [0], [1], [0, 0, 1, 1], [], []>} : vector<8x128xbf16>, vector<128x128xbf16>, vector<8x128xf32> -> vector<8x128xf32>
    %c0_9 = arith.constant 0 : index
    %c0_10 = arith.constant 0 : index
    %12 = vector.load %arg5[%c0_9, %c0_10] : memref<1x128xf32, #tpu.memory_space<vmem>>, vector<1x128xf32>
    %13 = vector.broadcast %12 : vector<1x128xf32> to vector<8x128xf32>
    %14 = arith.addf %11, %13 : vector<8x128xf32>
    %cst_11 = arith.constant 0.000000e+00 : f32
    %15 = vector.broadcast %cst_11 : f32 to vector<8x128xf32>
    %16 = arith.maximumf %14, %15 : vector<8x128xf32>
    %17 = arith.truncf %16 : vector<8x128xf32> to vector<8x128xbf16>
    %c0_12 = arith.constant 0 : index
    %c0_13 = arith.constant 0 : index
    %18 = vector.load %arg6[%c0_12, %c0_13] : memref<128x128xbf16, #tpu.memory_space<vmem>>, vector<128x128xbf16>
    %cst_14 = arith.constant dense<0.000000e+00> : vector<8x128xf32>
    %19 = tpu.matmul %17, %18, %cst_14 {dimension_numbers = #tpu.dot_dimension_numbers<[1], [0], [0], [1], [0, 0, 1, 1], [], []>} : vector<8x128xbf16>, vector<128x128xbf16>, vector<8x128xf32> -> vector<8x128xf32>
    %c0_15 = arith.constant 0 : index
    %c0_16 = arith.constant 0 : index
    %20 = vector.load %arg7[%c0_15, %c0_16] : memref<1x128xf32, #tpu.memory_space<vmem>>, vector<1x128xf32>
    %21 = vector.broadcast %20 : vector<1x128xf32> to vector<8x128xf32>
    %22 = arith.addf %19, %21 : vector<8x128xf32>
    %c0_17 = arith.constant 0 : index
    %c0_18 = arith.constant 0 : index
    %23 = vector.load %arg8[%c0_17, %c0_18] : memref<8x128xf32, #tpu.memory_space<vmem>>, vector<8x128xf32>
    tpu.vector_store %arg8[%c0_17, %c0_18], %22 {strides = array<i32>} : memref<8x128xf32, #tpu.memory_space<vmem>>, vector<8x128xf32>,
    return
  }
  func.func @transform_0(%arg0: i32) -> (i32, i32) {
    %c0_i32 = arith.constant 0 : i32
    %c0_i32_0 = arith.constant 0 : i32
    return %arg0, %c0_i32 : i32, i32
  }
  func.func @transform_1(%arg0: i32) -> (i32, i32) {
    %c0_i32 = arith.constant 0 : i32
    %c0_i32_0 = arith.constant 0 : i32
    %c0_i32_1 = arith.constant 0 : i32
    return %c0_i32, %c0_i32_0 : i32, i32
  }
  func.func @transform_2(%arg0: i32) -> (i32, i32) {
    %c0_i32 = arith.constant 0 : i32
    %c0_i32_0 = arith.constant 0 : i32
    %c0_i32_1 = arith.constant 0 : i32
    return %c0_i32, %c0_i32_0 : i32, i32
  }
  func.func @transform_3(%arg0: i32) -> (i32, i32) {
    %c0_i32 = arith.constant 0 : i32
    %c0_i32_0 = arith.constant 0 : i32
    %c0_i32_1 = arith.constant 0 : i32
    return %c0_i32, %c0_i32_0 : i32, i32
  }
  func.func @transform_4(%arg0: i32) -> (i32, i32) {
    %c0_i32 = arith.constant 0 : i32
    %c0_i32_0 = arith.constant 0 : i32
    %c0_i32_1 = arith.constant 0 : i32
    return %c0_i32, %c0_i32_0 : i32, i32
  }
  func.func @transform_5(%arg0: i32) -> (i32, i32) {
    %c0_i32 = arith.constant 0 : i32
    %c0_i32_0 = arith.constant 0 : i32
    %c0_i32_1 = arith.constant 0 : i32
    return %c0_i32, %c0_i32_0 : i32, i32
  }
  func.func @transform_6(%arg0: i32) -> (i32, i32) {
    %c0_i32 = arith.constant 0 : i32
    %c0_i32_0 = arith.constant 0 : i32
    %c0_i32_1 = arith.constant 0 : i32
    return %c0_i32, %c0_i32_0 : i32, i32
  }
  func.func @transform_7(%arg0: i32) -> (i32, i32) {
    %c0_i32 = arith.constant 0 : i32
    %c0_i32_0 = arith.constant 0 : i32
    return %arg0, %c0_i32 : i32, i32
  }
}

module attributes {stable_mosaic.version = 11 : i64} {
  func.func @mlp_kernel(%arg0: i32, %arg1: memref<8x32xf32, #tpu.memory_space<vmem>>, %arg2: memref<32x128xbf16, #tpu.memory_space<vmem>>, %arg3: memref<1x128xf32, #tpu.memory_space<vmem>>, %arg4: memref<128x128xbf16, #tpu.memory_space<vmem>>, %arg5: memref<1x128xf32, #tpu.memory_space<vmem>>, %arg6: memref<128x128xbf16, #tpu.memory_space<vmem>>, %arg7: memref<1x128xf32, #tpu.memory_space<vmem>>, %arg8: memref<8x128xf32, #tpu.memory_space<vmem>>) attributes {dimension_semantics = [#tpu.dimension_semantics<parallel>], iteration_bounds = array<i64: 1>, scalar_prefetch = 0 : i64, scratch_operands = 0 : i64, tpu.core_type = #tpu.core_type<tc>, window_params = [{transform_indices = @transform_0, window_bounds = array<i64: 8, 32>}, {pipeline_mode = #tpu.pipeline_mode<synchronous>, transform_indices = @transform_1, window_bounds = array<i64: 32, 128>}, {pipeline_mode = #tpu.pipeline_mode<synchronous>, transform_indices = @transform_2, window_bounds = array<i64: 1, 128>}, {pipeline_mode = #tpu.pipeline_mode<synchronous>, transform_indices = @transform_3, window_bounds = array<i64: 128, 128>}, {pipeline_mode = #tpu.pipeline_mode<synchronous>, transform_indices = @transform_4, window_bounds = array<i64: 1, 128>}, {pipeline_mode = #tpu.pipeline_mode<synchronous>, transform_indices = @transform_5, window_bounds = array<i64: 128, 128>}, {pipeline_mode = #tpu.pipeline_mode<synchronous>, transform_indices = @transform_6, window_bounds = array<i64: 1, 128>}, {transform_indices = @transform_7, window_bounds = array<i64: 8, 128>}]} {
    %c0 = arith.constant 0 : index
    %c0_0 = arith.constant 0 : index
    %0 = vector.load %arg1[%c0, %c0_0] : memref<8x32xf32, #tpu.memory_space<vmem>>, vector<8x32xf32>
    %1 = arith.truncf %0 : vector<8x32xf32> to vector<8x32xbf16>
    %c0_1 = arith.constant 0 : index
    %c0_2 = arith.constant 0 : index
    %2 = vector.load %arg2[%c0_1, %c0_2] : memref<32x128xbf16, #tpu.memory_space<vmem>>, vector<32x128xbf16>
    %cst = arith.constant dense<0.000000e+00> : vector<8x128xf32>
    %3 = tpu.matmul %1, %2, %cst {dimension_numbers = #tpu.dot_dimension_numbers<[1], [0], [0], [1], [0, 0, 1, 1], [], []>} : vector<8x32xbf16>, vector<32x128xbf16>, vector<8x128xf32> -> vector<8x128xf32>
    %c0_3 = arith.constant 0 : index
    %c0_4 = arith.constant 0 : index
    %4 = vector.load %arg3[%c0_3, %c0_4] : memref<1x128xf32, #tpu.memory_space<vmem>>, vector<1x128xf32>
    %5 = vector.broadcast %4 : vector<1x128xf32> to vector<8x128xf32>
    %6 = arith.addf %3, %5 : vector<8x128xf32>
    %cst_5 = arith.constant 0.000000e+00 : f32
    %7 = vector.broadcast %cst_5 : f32 to vector<8x128xf32>
    %8 = arith.maximumf %6, %7 : vector<8x128xf32>
    %9 = arith.truncf %8 : vector<8x128xf32> to vector<8x128xbf16>
    %c0_6 = arith.constant 0 : index
    %c0_7 = arith.constant 0 : index
    %10 = vector.load %arg4[%c0_6, %c0_7] : memref<128x128xbf16, #tpu.memory_space<vmem>>, vector<128x128xbf16>
    %cst_8 = arith.constant dense<0.000000e+00> : vector<8x128xf32>
    %11 = tpu.matmul %9, %10, %cst_8 {dimension_numbers = #tpu.dot_dimension_numbers<[1], [0], [0], [1], [0, 0, 1, 1], [], []>} : vector<8x128xbf16>, vector<128x128xbf16>, vector<8x128xf32> -> vector<8x128xf32>
    %c0_9 = arith.constant 0 : index
    %c0_10 = arith.constant 0 : index
    %12 = vector.load %arg5[%c0_9, %c0_10] : memref<1x128xf32, #tpu.memory_space<vmem>>, vector<1x128xf32>
    %13 = vector.broadcast %12 : vector<1x128xf32> to vector<8x128xf32>
    %14 = arith.addf %11, %13 : vector<8x128xf32>
    %cst_11 = arith.constant 0.000000e+00 : f32
    %15 = vector.broadcast %cst_11 : f32 to vector<8x128xf32>
    %16 = arith.maximumf %14, %15 : vector<8x128xf32>
    %17 = arith.truncf %16 : vector<8x128xf32> to vector<8x128xbf16>
    %c0_12 = arith.constant 0 : index
    %c0_13 = arith.constant 0 : index
    %18 = vector.load %arg6[%c0_12, %c0_13] : memref<128x128xbf16, #tpu.memory_space<vmem>>, vector<128x128xbf16>
    %cst_14 = arith.constant dense<0.000000e+00> : vector<8x128xf32>
    %19 = tpu.matmul %17, %18, %cst_14 {dimension_numbers = #tpu.dot_dimension_numbers<[1], [0], [0], [1], [0, 0, 1, 1], [], []>} : vector<8x128xbf16>, vector<128x128xbf16>, vector<8x128xf32> -> vector<8x128xf32>
    %c0_15 = arith.constant 0 : index
    %c0_16 = arith.constant 0 : index
    %20 = vector.load %arg7[%c0_15, %c0_16] : memref<1x128xf32, #tpu.memory_space<vmem>>, vector<1x128xf32>
    %21 = vector.broadcast %20 : vector<1x128xf32> to vector<8x128xf32>
    %22 = arith.addf %19, %21 : vector<8x128xf32>
    %c0_17 = arith.constant 0 : index
    %c0_18 = arith.constant 0 : index
    %23 = vector.load %arg8[%c0_17, %c0_18] : memref<8x128xf32, #tpu.memory_space<vmem>>, vector<8x128xf32>
    tpu.vector_store %arg8[%c0_17, %c0_18], %22 {strides = array<i32>} : memref<8x128xf32, #tpu.memory_space<vmem>>, vector<8x128xf32>,
    return
  }
  func.func @transform_0(%arg0: i32) -> (i32, i32) {
    %c0_i32 = arith.constant 0 : i32
    %c0_i32_0 = arith.constant 0 : i32
    return %arg0, %c0_i32 : i32, i32
  }
  func.func @transform_1(%arg0: i32) -> (i32, i32) {
    %c0_i32 = arith.constant 0 : i32
    %c0_i32_0 = arith.constant 0 : i32
    %c0_i32_1 = arith.constant 0 : i32
    return %c0_i32, %c0_i32_0 : i32, i32
  }
  func.func @transform_2(%arg0: i32) -> (i32, i32) {
    %c0_i32 = arith.constant 0 : i32
    %c0_i32_0 = arith.constant 0 : i32
    %c0_i32_1 = arith.constant 0 : i32
    return %c0_i32, %c0_i32_0 : i32, i32
  }
  func.func @transform_3(%arg0: i32) -> (i32, i32) {
    %c0_i32 = arith.constant 0 : i32
    %c0_i32_0 = arith.constant 0 : i32
    %c0_i32_1 = arith.constant 0 : i32
    return %c0_i32, %c0_i32_0 : i32, i32
  }
  func.func @transform_4(%arg0: i32) -> (i32, i32) {
    %c0_i32 = arith.constant 0 : i32
    %c0_i32_0 = arith.constant 0 : i32
    %c0_i32_1 = arith.constant 0 : i32
    return %c0_i32, %c0_i32_0 : i32, i32
  }
  func.func @transform_5(%arg0: i32) -> (i32, i32) {
    %c0_i32 = arith.constant 0 : i32
    %c0_i32_0 = arith.constant 0 : i32
    %c0_i32_1 = arith.constant 0 : i32
    return %c0_i32, %c0_i32_0 : i32, i32
  }
  func.func @transform_6(%arg0: i32) -> (i32, i32) {
    %c0_i32 = arith.constant 0 : i32
    %c0_i32_0 = arith.constant 0 : i32
    %c0_i32_1 = arith.constant 0 : i32
    return %c0_i32, %c0_i32_0 : i32, i32
  }
  func.func @transform_7(%arg0: i32) -> (i32, i32) {
    %c0_i32 = arith.constant 0 : i32
    %c0_i32_0 = arith.constant 0 : i32
    return %arg0, %c0_i32 : i32, i32
  }
}

</mosaic_0001>

<llo_original>
// kernel: _forward_impl.1
$region0: #{_forward_impl.1}
  #allocation0 [shape = 'u32[]', space=smem, size = 0x4, offset = 0x4, fixed_abs, tag = 'smem constant byte address 0x4 - core index']
  #allocation1 [shape = 'u32[144,128]{1,0:T(1,128)}', space=vmem, size = 0x12000, scoped, tag = 'internal scratch']
  %s0 = inlined_call_operand.hbm [shape: f32[8,32], index: 0, kind: input, shape index: {}]
  %s1 = inlined_call_operand.hbm [shape: bf16[32,128], index: 1, kind: input, shape index: {}]
  %s2 = inlined_call_operand.hbm [shape: f32[1,128], index: 2, kind: input, shape index: {}]
  %s3 = inlined_call_operand.hbm [shape: bf16[128,128], index: 3, kind: input, shape index: {}]
  %s4 = inlined_call_operand.hbm [shape: f32[1,128], index: 4, kind: input, shape index: {}]
  %s5 = inlined_call_operand.hbm [shape: bf16[128,128], index: 5, kind: input, shape index: {}]
  %s6 = inlined_call_operand.hbm [shape: f32[1,128], index: 6, kind: input, shape index: {}]
  %s7 = inlined_call_operand.hbm [shape: f32[8,128], index: 7, kind: output, shape index: {}]
  %s8 = sld [smem:[#allocation0]]
  $region66: #{_forward_impl.1} parent=0
    _
  %s10 = ssub.s32 1, %s8
  %s11 = scalar_select 0, %s10, %s8
  $region1: #{_forward_impl.1} parent=0
    #allocation2 [shape = 'u8[4096]{0}', space=vmem, size = 0x1000, scoped, tag = 'input window, operand 0, single buffered']
    #allocation3 [shape = 's32[1]{0}', space=sflag, size = 0x4, scoped, tag = 'scoped memory for _forward_impl.1']
    #allocation4 [shape = 's32[1]{0}', space=sflag, size = 0x4, scoped, tag = 'scoped memory for _forward_impl.1']
    #allocation5 [shape = 'u8[8192]{0}', space=vmem, size = 0x2000, scoped, tag = 'input window, operand 1, single buffered']
    #allocation6 [shape = 's32[1]{0}', space=sflag, size = 0x4, scoped, tag = 'scoped memory for _forward_impl.1']
    #allocation7 [shape = 'u8[512]{0}', space=vmem, size = 0x400, scoped, tag = 'input window, operand 2, single buffered']
    #allocation8 [shape = 'u8[32768]{0}', space=vmem, size = 0x8000, scoped, tag = 'input window, operand 3, single buffered']
    #allocation9 [shape = 's32[1]{0}', space=sflag, size = 0x4, scoped, tag = 'scoped memory for _forward_impl.1']
    #allocation10 [shape = 'u8[512]{0}', space=vmem, size = 0x400, scoped, tag = 'input window, operand 4, single buffered']
    #allocation11 [shape = 'u8[32768]{0}', space=vmem, size = 0x8000, scoped, tag = 'input window, operand 5, single buffered']
    #allocation12 [shape = 's32[1]{0}', space=sflag, size = 0x4, scoped, tag = 'scoped memory for _forward_impl.1']
    #allocation13 [shape = 'u8[512]{0}', space=vmem, size = 0x400, scoped, tag = 'input window, operand 6, single buffered']
    #allocation14 [shape = 'u8[4096]{0}', space=vmem, size = 0x1000, scoped, tag = 'output window, operand 0, single buffered']
    %12 = vsyncpa [#allocation3], 0
    %13 = vsyncpa [#allocation6], 0
    %14 = vsyncpa [#allocation9], 0
    %15 = vsyncpa [#allocation12], 0
    %16 = vsyncpa [#allocation4], 0
    // Predicated region
    $region2: #{_forward_impl.1} parent=1 // pred_check
      _
    $region3: #{_forward_impl.1} parent=1 // pred_check_branch
      %18 = sbr.rel (0) target = $region5
    $region4: #{_forward_impl.1} parent=1 // pred_region
      %s20 = ssub.s32 128, 128
      %21 = vsyncadd [#allocation3], %s20
      %s23 = sshll.u32 [#allocation2], 4
      %s24 = int_to_ptr.vmem [resolvable:$true] %s23
      %26 = dma.hbm_to_vmem [thread:$0]  %s0, 128, %s24, [#allocation3]
    $region5: #{_forward_impl.1} parent=1 // pred_fallthru
      _
    // Predicated region
    $region6: #{_forward_impl.1} parent=1 // pred_check
      _
    $region7: #{_forward_impl.1} parent=1 // pred_check_branch
      %28 = sbr.rel (0) target = $region9
    $region8: #{_forward_impl.1} parent=1 // pred_region
      %s30 = ssub.s32 256, 256
      %31 = vsyncadd [#allocation6], %s30
      %s32 = sshll.u32 [#allocation5], 4
      %s33 = int_to_ptr.vmem [resolvable:$true] %s32
      %38 = dma.hbm_to_vmem [thread:$0]  %s1, 256, %s33, [#allocation6], 64, 64, 4
    $region9: #{_forward_impl.1} parent=1 // pred_fallthru
      _
    // Predicated region
    $region10: #{_forward_impl.1} parent=1 // pred_check
      _
    $region11: #{_forward_impl.1} parent=1 // pred_check_branch
      %40 = sbr.rel (0) target = $region13
    $region12: #{_forward_impl.1} parent=1 // pred_region
      %s42 = ssub.s32 16, 16
      %43 = vsyncadd [#allocation6], %s42
      %s45 = sshll.u32 [#allocation7], 4
      %s46 = int_to_ptr.vmem [resolvable:$true] %s45
      %48 = dma.hbm_to_vmem [thread:$0]  %s2, 16, %s46, [#allocation6]
    $region13: #{_forward_impl.1} parent=1 // pred_fallthru
      _
    // Predicated region
    $region14: #{_forward_impl.1} parent=1 // pred_check
      _
    $region15: #{_forward_impl.1} parent=1 // pred_check_branch
      %50 = sbr.rel (0) target = $region17
    $region16: #{_forward_impl.1} parent=1 // pred_region
      %s52 = ssub.s32 1024, 1024
      %53 = vsyncadd [#allocation9], %s52
      %s54 = sshll.u32 [#allocation8], 4
      %s55 = int_to_ptr.vmem [resolvable:$true] %s54
      %60 = dma.hbm_to_vmem [thread:$0]  %s3, 1024, %s55, [#allocation9], 64, 64, 4
    $region17: #{_forward_impl.1} parent=1 // pred_fallthru
      _
    // Predicated region
    $region18: #{_forward_impl.1} parent=1 // pred_check
      _
    $region19: #{_forward_impl.1} parent=1 // pred_check_branch
      %62 = sbr.rel (0) target = $region21
    $region20: #{_forward_impl.1} parent=1 // pred_region
      %s64 = ssub.s32 16, 16
      %65 = vsyncadd [#allocation9], %s64
      %s67 = sshll.u32 [#allocation10], 4
      %s68 = int_to_ptr.vmem [resolvable:$true] %s67
      %70 = dma.hbm_to_vmem [thread:$0]  %s4, 16, %s68, [#allocation9]
    $region21: #{_forward_impl.1} parent=1 // pred_fallthru
      _
    // Predicated region
    $region22: #{_forward_impl.1} parent=1 // pred_check
      _
    $region23: #{_forward_impl.1} parent=1 // pred_check_branch
      %72 = sbr.rel (0) target = $region25
    $region24: #{_forward_impl.1} parent=1 // pred_region
      %s74 = ssub.s32 1024, 1024
      %75 = vsyncadd [#allocation12], %s74
      %s76 = sshll.u32 [#allocation11], 4
      %s77 = int_to_ptr.vmem [resolvable:$true] %s76
      %82 = dma.hbm_to_vmem [thread:$0]  %s5, 1024, %s77, [#allocation12], 64, 64, 4
    $region25: #{_forward_impl.1} parent=1 // pred_fallthru
      _
    // Predicated region
    $region26: #{_forward_impl.1} parent=1 // pred_check
      _
    $region27: #{_forward_impl.1} parent=1 // pred_check_branch
      %84 = sbr.rel (0) target = $region29
    $region28: #{_forward_impl.1} parent=1 // pred_region
      %s86 = ssub.s32 16, 16
      %87 = vsyncadd [#allocation12], %s86
      %s89 = sshll.u32 [#allocation13], 4
      %s90 = int_to_ptr.vmem [resolvable:$true] %s89
      %92 = dma.hbm_to_vmem [thread:$0]  %s6, 16, %s90, [#allocation12]
    $region29: #{_forward_impl.1} parent=1 // pred_fallthru
      _
    // Predicated region
    $region30: #{_forward_impl.1} parent=1 // pred_check
      _
    $region31: #{_forward_impl.1} parent=1 // pred_check_branch
      %94 = sbr.rel (0) target = $region33
    $region32: #{_forward_impl.1} parent=1 // pred_region
      %95 = dma.done [#allocation3], 128
    $region33: #{_forward_impl.1} parent=1 // pred_fallthru
      _
    // Predicated region
    $region34: #{_forward_impl.1} parent=1 // pred_check
      _
    $region35: #{_forward_impl.1} parent=1 // pred_check_branch
      %97 = sbr.rel (0) target = $region37
    $region36: #{_forward_impl.1} parent=1 // pred_region
      %98 = dma.done [#allocation6], 256
    $region37: #{_forward_impl.1} parent=1 // pred_fallthru
      _
    // Predicated region
    $region38: #{_forward_impl.1} parent=1 // pred_check
      _
    $region39: #{_forward_impl.1} parent=1 // pred_check_branch
      %100 = sbr.rel (0) target = $region41
    $region40: #{_forward_impl.1} parent=1 // pred_region
      %101 = dma.done [#allocation6], 16
    $region41: #{_forward_impl.1} parent=1 // pred_fallthru
      _
    // Predicated region
    $region42: #{_forward_impl.1} parent=1 // pred_check
      _
    $region43: #{_forward_impl.1} parent=1 // pred_check_branch
      %103 = sbr.rel (0) target = $region45
    $region44: #{_forward_impl.1} parent=1 // pred_region
      %104 = dma.done [#allocation9], 1024
    $region45: #{_forward_impl.1} parent=1 // pred_fallthru
      _
    // Predicated region
    $region46: #{_forward_impl.1} parent=1 // pred_check
      _
    $region47: #{_forward_impl.1} parent=1 // pred_check_branch
      %106 = sbr.rel (0) target = $region49
    $region48: #{_forward_impl.1} parent=1 // pred_region
      %107 = dma.done [#allocation9], 16
    $region49: #{_forward_impl.1} parent=1 // pred_fallthru
      _
    // Predicated region
    $region50: #{_forward_impl.1} parent=1 // pred_check
      _
    $region51: #{_forward_impl.1} parent=1 // pred_check_branch
      %109 = sbr.rel (0) target = $region53
    $region52: #{_forward_impl.1} parent=1 // pred_region
      %110 = dma.done [#allocation12], 1024
    $region53: #{_forward_impl.1} parent=1 // pred_fallthru
      _
    // Predicated region
    $region54: #{_forward_impl.1} parent=1 // pred_check
      _
    $region55: #{_forward_impl.1} parent=1 // pred_check_branch
      %112 = sbr.rel (0) target = $region57
    $region56: #{_forward_impl.1} parent=1 // pred_region
      %113 = dma.done [#allocation12], 16
    $region57: #{_forward_impl.1} parent=1 // pred_fallthru
      _
    %v115 = vld [vmem:[#allocation2] sm:$0xff]
    %v116 = vpack.c.bf16 %v115, %v115
    %v117 = vld [vmem:[#allocation5] sm:$0xf]
    %v118 = vld [vmem:[#allocation5 + $0x4] sm:$0xf]
    %v119 = vld [vmem:[#allocation5 + $0x8] sm:$0xf]
    %v120 = vld [vmem:[#allocation5 + $0xc] sm:$0xf]
    %v121 = vld [vmem:[#allocation7] sm:$0x1]
    %v123 = vlaneseq
    %v124 = vshrl.u32 %v123, 7
    %v125 = vsub.s32 0, %v124
    %v126 = vrot.slane %v121, %v125
    %v132 = vunpack.c.l.b16 %v117
    %v133 = vunpack.c.l.b16 %v118
    %v134 = vunpack.c.l.b16 %v119
    %v135 = vunpack.c.l.b16 %v120
    %v136 = vpack.c.b16 %v133, %v132
    %v137 = vpack.c.b16 %v135, %v134
    %vm140 = vcmask 261120
    %v142 = vsel %vm140, %v116, 0
    %144 = vmatprep.subr.bf16.mxu0 0
    %145 = vmatpush1.bf16.msra.mxu0 %v136
    %146 = vmatprep.subr.bf16.mxu0 0
    %147 = vmatpush1.bf16.msra.mxu0 %v137
    %148 = vmatprep.subr.bf16.mxu0 0
    %149 = vmatpush1.bf16.msra.mxu0 0
    %150 = vmatprep.subr.bf16.mxu0 0
    %151 = vmatpush1.bf16.msra.mxu0 0
    %152 = vmatprep.subr.bf16.mxu0 0
    %153 = vmatpush1.bf16.msra.mxu0 0
    %154 = vmatprep.subr.bf16.mxu0 0
    %155 = vmatpush1.bf16.msra.mxu0 0
    %156 = vmatprep.subr.bf16.mxu0 0
    %157 = vmatpush1.bf16.msra.mxu0 0
    %158 = vmatprep.subr.bf16.mxu0 0
    %159 = vmatpush1.bf16.msra.mxu0 0
    %160 = vmatprep.subr.bf16.mxu0 0
    %161 = vmatpush1.bf16.msra.mxu0 0
    %162 = vmatprep.subr.bf16.mxu0 0
    %163 = vmatpush1.bf16.msra.mxu0 0
    %164 = vmatprep.subr.bf16.mxu0 0
    %165 = vmatpush1.bf16.msra.mxu0 0
    %166 = vmatprep.subr.bf16.mxu0 0
    %167 = vmatpush1.bf16.msra.mxu0 0
    %168 = vmatprep.subr.bf16.mxu0 0
    %169 = vmatpush1.bf16.msra.mxu0 0
    %170 = vmatprep.subr.bf16.mxu0 0
    %171 = vmatpush1.bf16.msra.mxu0 0
    %172 = vmatprep.subr.bf16.mxu0 0
    %173 = vmatpush1.bf16.msra.mxu0 0
    %174 = vmatprep.subr.bf16.mxu0 0
    %175 = vmatpush1.bf16.msra.mxu0 0
    %176 = vmatprep.mubr.bf16.mxu0 0
    %177 = vmatmul.mubr.bf16.gmra.mrb[0].mxu0 %v142
    %v178 = vpop.f32.mrb[0].mxu0
    %v179 = vadd.f32 %v126, %v178
    %v180 = vpop.f32.mrb[0].mxu0
    %v181 = vpop.f32.mrb[0].mxu0
    %v182 = vpop.f32.mrb[0].mxu0
    %183 = vdwg.mxu0
    %v184 = vmax.f32 %v179, 0.0
    %v185 = vpack.c.bf16 %v184, %v184
    %v186 = vld [vmem:[#allocation8] sm:$0xf]
    %v187 = vld [vmem:[#allocation8 + $0x4] sm:$0xf]
    %v188 = vld [vmem:[#allocation8 + $0x8] sm:$0xf]
    %v189 = vld [vmem:[#allocation8 + $0xc] sm:$0xf]
    %v190 = vld [vmem:[#allocation8 + $0x10] sm:$0xf]
    %v191 = vld [vmem:[#allocation8 + $0x14] sm:$0xf]
    %v192 = vld [vmem:[#allocation8 + $0x18] sm:$0xf]
    %v193 = vld [vmem:[#allocation8 + $0x1c] sm:$0xf]
    %v194 = vld [vmem:[#allocation8 + $0x20] sm:$0xf]
    %v195 = vld [vmem:[#allocation8 + $0x24] sm:$0xf]
    %v196 = vld [vmem:[#allocation8 + $0x28] sm:$0xf]
    %v197 = vld [vmem:[#allocation8 + $0x2c] sm:$0xf]
    %v198 = vld [vmem:[#allocation8 + $0x30] sm:$0xf]
    %v199 = vld [vmem:[#allocation8 + $0x34] sm:$0xf]
    %v200 = vld [vmem:[#allocation8 + $0x38] sm:$0xf]
    %v201 = vld [vmem:[#allocation8 + $0x3c] sm:$0xf]
    %v202 = vld [vmem:[#allocation10] sm:$0x1]
    %v204 = vlaneseq
    %v205 = vshrl.u32 %v204, 7
    %v206 = vsub.s32 0, %v205
    %v207 = vrot.slane %v202, %v206
    %v225 = vunpack.c.l.b16 %v186
    %v226 = vunpack.c.l.b16 %v187
    %v227 = vunpack.c.l.b16 %v188
    %v228 = vunpack.c.l.b16 %v189
    %v229 = vunpack.c.l.b16 %v190
    %v230 = vunpack.c.l.b16 %v191
    %v231 = vunpack.c.l.b16 %v192
    %v232 = vunpack.c.l.b16 %v193
    %v233 = vunpack.c.l.b16 %v194
    %v234 = vunpack.c.l.b16 %v195
    %v235 = vunpack.c.l.b16 %v196
    %v236 = vunpack.c.l.b16 %v197
    %v237 = vunpack.c.l.b16 %v198
    %v238 = vunpack.c.l.b16 %v199
    %v239 = vunpack.c.l.b16 %v200
    %v240 = vunpack.c.l.b16 %v201
    %v241 = vpack.c.b16 %v226, %v225
    %v242 = vpack.c.b16 %v228, %v227
    %v243 = vpack.c.b16 %v230, %v229
    %v244 = vpack.c.b16 %v232, %v231
    %v245 = vpack.c.b16 %v234, %v233
    %v246 = vpack.c.b16 %v236, %v235
    %v247 = vpack.c.b16 %v238, %v237
    %v248 = vpack.c.b16 %v240, %v239
    %257 = vmatprep.subr.bf16.mxu0 0
    %258 = vmatpush1.bf16.msra.mxu0 %v241
    %259 = vmatprep.subr.bf16.mxu0 0
    %260 = vmatpush1.bf16.msra.mxu0 %v242
    %261 = vmatprep.subr.bf16.mxu0 0
    %262 = vmatpush1.bf16.msra.mxu0 %v243
    %263 = vmatprep.subr.bf16.mxu0 0
    %264 = vmatpush1.bf16.msra.mxu0 %v244
    %265 = vmatprep.subr.bf16.mxu0 0
    %266 = vmatpush1.bf16.msra.mxu0 %v245
    %267 = vmatprep.subr.bf16.mxu0 0
    %268 = vmatpush1.bf16.msra.mxu0 %v246
    %269 = vmatprep.subr.bf16.mxu0 0
    %270 = vmatpush1.bf16.msra.mxu0 %v247
    %271 = vmatprep.subr.bf16.mxu0 0
    %272 = vmatpush1.bf16.msra.mxu0 %v248
    %273 = vmatprep.subr.bf16.mxu0 0
    %274 = vmatpush1.bf16.msra.mxu0 0
    %275 = vmatprep.subr.bf16.mxu0 0
    %276 = vmatpush1.bf16.msra.mxu0 0
    %277 = vmatprep.subr.bf16.mxu0 0
    %278 = vmatpush1.bf16.msra.mxu0 0
    %279 = vmatprep.subr.bf16.mxu0 0
    %280 = vmatpush1.bf16.msra.mxu0 0
    %281 = vmatprep.subr.bf16.mxu0 0
    %282 = vmatpush1.bf16.msra.mxu0 0
    %283 = vmatprep.subr.bf16.mxu0 0
    %284 = vmatpush1.bf16.msra.mxu0 0
    %285 = vmatprep.subr.bf16.mxu0 0
    %286 = vmatpush1.bf16.msra.mxu0 0
    %287 = vmatprep.subr.bf16.mxu0 0
    %288 = vmatpush1.bf16.msra.mxu0 0
    %289 = vmatprep.mubr.bf16.mxu0 0
    %290 = vmatmul.mubr.bf16.gmra.mrb[0].mxu0 %v185
    %v291 = vpop.f32.mrb[0].mxu0
    %v292 = vadd.f32 %v207, %v291
    %v293 = vpop.f32.mrb[0].mxu0
    %v294 = vpop.f32.mrb[0].mxu0
    %v295 = vpop.f32.mrb[0].mxu0
    %296 = vdwg.mxu0
    %v297 = vmax.f32 %v292, 0.0
    %v298 = vpack.c.bf16 %v297, %v297
    %v299 = vld [vmem:[#allocation11] sm:$0xf]
    %v300 = vld [vmem:[#allocation11 + $0x4] sm:$0xf]
    %v301 = vld [vmem:[#allocation11 + $0x8] sm:$0xf]
    %v302 = vld [vmem:[#allocation11 + $0xc] sm:$0xf]
    %v303 = vld [vmem:[#allocation11 + $0x10] sm:$0xf]
    %v304 = vld [vmem:[#allocation11 + $0x14] sm:$0xf]
    %v305 = vld [vmem:[#allocation11 + $0x18] sm:$0xf]
    %v306 = vld [vmem:[#allocation11 + $0x1c] sm:$0xf]
    %v307 = vld [vmem:[#allocation11 + $0x20] sm:$0xf]
    %v308 = vld [vmem:[#allocation11 + $0x24] sm:$0xf]
    %v309 = vld [vmem:[#allocation11 + $0x28] sm:$0xf]
    %v310 = vld [vmem:[#allocation11 + $0x2c] sm:$0xf]
    %v311 = vld [vmem:[#allocation11 + $0x30] sm:$0xf]
    %v312 = vld [vmem:[#allocation11 + $0x34] sm:$0xf]
    %v313 = vld [vmem:[#allocation11 + $0x38] sm:$0xf]
    %v314 = vld [vmem:[#allocation11 + $0x3c] sm:$0xf]
    %v315 = vld [vmem:[#allocation13] sm:$0x1]
    %v317 = vlaneseq
    %v318 = vshrl.u32 %v317, 7
    %v319 = vsub.s32 0, %v318
    %v320 = vrot.slane %v315, %v319
    %v338 = vunpack.c.l.b16 %v299
    %v339 = vunpack.c.l.b16 %v300
    %v340 = vunpack.c.l.b16 %v301
    %v341 = vunpack.c.l.b16 %v302
    %v342 = vunpack.c.l.b16 %v303
    %v343 = vunpack.c.l.b16 %v304
    %v344 = vunpack.c.l.b16 %v305
    %v345 = vunpack.c.l.b16 %v306
    %v346 = vunpack.c.l.b16 %v307
    %v347 = vunpack.c.l.b16 %v308
    %v348 = vunpack.c.l.b16 %v309
    %v349 = vunpack.c.l.b16 %v310
    %v350 = vunpack.c.l.b16 %v311
    %v351 = vunpack.c.l.b16 %v312
    %v352 = vunpack.c.l.b16 %v313
    %v353 = vunpack.c.l.b16 %v314
    %v354 = vpack.c.b16 %v339, %v338
    %v355 = vpack.c.b16 %v341, %v340
    %v356 = vpack.c.b16 %v343, %v342
    %v357 = vpack.c.b16 %v345, %v344
    %v358 = vpack.c.b16 %v347, %v346
    %v359 = vpack.c.b16 %v349, %v348
    %v360 = vpack.c.b16 %v351, %v350
    %v361 = vpack.c.b16 %v353, %v352
    %370 = vmatprep.subr.bf16.mxu0 0
    %371 = vmatpush1.bf16.msra.mxu0 %v354
    %372 = vmatprep.subr.bf16.mxu0 0
    %373 = vmatpush1.bf16.msra.mxu0 %v355
    %374 = vmatprep.subr.bf16.mxu0 0
    %375 = vmatpush1.bf16.msra.mxu0 %v356
    %376 = vmatprep.subr.bf16.mxu0 0
    %377 = vmatpush1.bf16.msra.mxu0 %v357
    %378 = vmatprep.subr.bf16.mxu0 0
    %379 = vmatpush1.bf16.msra.mxu0 %v358
    %380 = vmatprep.subr.bf16.mxu0 0
    %381 = vmatpush1.bf16.msra.mxu0 %v359
    %382 = vmatprep.subr.bf16.mxu0 0
    %383 = vmatpush1.bf16.msra.mxu0 %v360
    %384 = vmatprep.subr.bf16.mxu0 0
    %385 = vmatpush1.bf16.msra.mxu0 %v361
    %386 = vmatprep.subr.bf16.mxu0 0
    %387 = vmatpush1.bf16.msra.mxu0 0
    %388 = vmatprep.subr.bf16.mxu0 0
    %389 = vmatpush1.bf16.msra.mxu0 0
    %390 = vmatprep.subr.bf16.mxu0 0
    %391 = vmatpush1.bf16.msra.mxu0 0
    %392 = vmatprep.subr.bf16.mxu0 0
    %393 = vmatpush1.bf16.msra.mxu0 0
    %394 = vmatprep.subr.bf16.mxu0 0
    %395 = vmatpush1.bf16.msra.mxu0 0
    %396 = vmatprep.subr.bf16.mxu0 0
    %397 = vmatpush1.bf16.msra.mxu0 0
    %398 = vmatprep.subr.bf16.mxu0 0
    %399 = vmatpush1.bf16.msra.mxu0 0
    %400 = vmatprep.subr.bf16.mxu0 0
    %401 = vmatpush1.bf16.msra.mxu0 0
    %402 = vmatprep.mubr.bf16.mxu0 0
    %403 = vmatmul.mubr.bf16.gmra.mrb[0].mxu0 %v298
    %v404 = vpop.f32.mrb[0].mxu0
    %v405 = vadd.f32 %v320, %v404
    %v406 = vpop.f32.mrb[0].mxu0
    %v407 = vpop.f32.mrb[0].mxu0
    %v408 = vpop.f32.mrb[0].mxu0
    %409 = vdwg.mxu0
    %410 = vst [vmem:[#allocation14] sm:$0xff] %v405
    // Predicated region
    $region58: #{_forward_impl.1} parent=1 // pred_check
      _
    $region59: #{_forward_impl.1} parent=1 // pred_check_branch
      %412 = sbr.rel (0) target = $region61
    $region60: #{_forward_impl.1} parent=1 // pred_region
      %s414 = ssub.s32 128, 128
      %415 = vsyncadd [#allocation4], %s414
      %s417 = sshll.u32 [#allocation14], 4
      %s418 = int_to_ptr.vmem [resolvable:$true] %s417
      %420 = dma.vmem_to_hbm [thread:$0]  %s418, 128, %s7, [#allocation4]
    $region61: #{_forward_impl.1} parent=1 // pred_fallthru
      _
    // Predicated region
    $region62: #{_forward_impl.1} parent=1 // pred_check
      _
    $region63: #{_forward_impl.1} parent=1 // pred_check_branch
      %422 = sbr.rel (0) target = $region65
    $region64: #{_forward_impl.1} parent=1 // pred_region
      %423 = dma.done [#allocation4], 128
    $region65: #{_forward_impl.1} parent=1 // pred_fallthru
      _
    %424 = vsyncpa [#allocation3], 1
    %425 = vsyncpa [#allocation6], 1
    %426 = vsyncpa [#allocation9], 1
    %427 = vsyncpa [#allocation12], 1
    %428 = vsyncpa [#allocation4], 1

// kernel: _forward_impl.1
$region0: #{_forward_impl.1}
  #allocation0 [shape = 'u32[]', space=smem, size = 0x4, offset = 0x4, fixed_abs, tag = 'smem constant byte address 0x4 - core index']
  #allocation1 [shape = 'u32[144,128]{1,0:T(1,128)}', space=vmem, size = 0x12000, scoped, tag = 'internal scratch']
  %s0 = inlined_call_operand.hbm [shape: f32[8,32], index: 0, kind: input, shape index: {}]
  %s1 = inlined_call_operand.hbm [shape: bf16[32,128], index: 1, kind: input, shape index: {}]
  %s2 = inlined_call_operand.hbm [shape: f32[1,128], index: 2, kind: input, shape index: {}]
  %s3 = inlined_call_operand.hbm [shape: bf16[128,128], index: 3, kind: input, shape index: {}]
  %s4 = inlined_call_operand.hbm [shape: f32[1,128], index: 4, kind: input, shape index: {}]
  %s5 = inlined_call_operand.hbm [shape: bf16[128,128], index: 5, kind: input, shape index: {}]
  %s6 = inlined_call_operand.hbm [shape: f32[1,128], index: 6, kind: input, shape index: {}]
  %s7 = inlined_call_operand.hbm [shape: f32[8,128], index: 7, kind: output, shape index: {}]
  %s8 = sld [smem:[#allocation0]]
  $region66: #{_forward_impl.1} parent=0
    _
  %s10 = ssub.s32 1, %s8
  %s11 = scalar_select 0, %s10, %s8
  $region1: #{_forward_impl.1} parent=0
    #allocation2 [shape = 'u8[4096]{0}', space=vmem, size = 0x1000, scoped, tag = 'input window, operand 0, single buffered']
    #allocation3 [shape = 's32[1]{0}', space=sflag, size = 0x4, scoped, tag = 'scoped memory for _forward_impl.1']
    #allocation4 [shape = 's32[1]{0}', space=sflag, size = 0x4, scoped, tag = 'scoped memory for _forward_impl.1']
    #allocation5 [shape = 'u8[8192]{0}', space=vmem, size = 0x2000, scoped, tag = 'input window, operand 1, single buffered']
    #allocation6 [shape = 's32[1]{0}', space=sflag, size = 0x4, scoped, tag = 'scoped memory for _forward_impl.1']
    #allocation7 [shape = 'u8[512]{0}', space=vmem, size = 0x400, scoped, tag = 'input window, operand 2, single buffered']
    #allocation8 [shape = 'u8[32768]{0}', space=vmem, size = 0x8000, scoped, tag = 'input window, operand 3, single buffered']
    #allocation9 [shape = 's32[1]{0}', space=sflag, size = 0x4, scoped, tag = 'scoped memory for _forward_impl.1']
    #allocation10 [shape = 'u8[512]{0}', space=vmem, size = 0x400, scoped, tag = 'input window, operand 4, single buffered']
    #allocation11 [shape = 'u8[32768]{0}', space=vmem, size = 0x8000, scoped, tag = 'input window, operand 5, single buffered']
    #allocation12 [shape = 's32[1]{0}', space=sflag, size = 0x4, scoped, tag = 'scoped memory for _forward_impl.1']
    #allocation13 [shape = 'u8[512]{0}', space=vmem, size = 0x400, scoped, tag = 'input window, operand 6, single buffered']
    #allocation14 [shape = 'u8[4096]{0}', space=vmem, size = 0x1000, scoped, tag = 'output window, operand 0, single buffered']
    %12 = vsyncpa [#allocation3], 0
    %13 = vsyncpa [#allocation6], 0
    %14 = vsyncpa [#allocation9], 0
    %15 = vsyncpa [#allocation12], 0
    %16 = vsyncpa [#allocation4], 0
    // Predicated region
    $region2: #{_forward_impl.1} parent=1 // pred_check
      _
    $region3: #{_forward_impl.1} parent=1 // pred_check_branch
      %18 = sbr.rel (0) target = $region5
    $region4: #{_forward_impl.1} parent=1 // pred_region
      %s20 = ssub.s32 128, 128
      %21 = vsyncadd [#allocation3], %s20
      %s23 = sshll.u32 [#allocation2], 4
      %s24 = int_to_ptr.vmem [resolvable:$true] %s23
      %26 = dma.hbm_to_vmem [thread:$0]  %s0, 128, %s24, [#allocation3]
    $region5: #{_forward_impl.1} parent=1 // pred_fallthru
      _
    // Predicated region
    $region6: #{_forward_impl.1} parent=1 // pred_check
      _
    $region7: #{_forward_impl.1} parent=1 // pred_check_branch
      %28 = sbr.rel (0) target = $region9
    $region8: #{_forward_impl.1} parent=1 // pred_region
      %s30 = ssub.s32 256, 256
      %31 = vsyncadd [#allocation6], %s30
      %s32 = sshll.u32 [#allocation5], 4
      %s33 = int_to_ptr.vmem [resolvable:$true] %s32
      %38 = dma.hbm_to_vmem [thread:$0]  %s1, 256, %s33, [#allocation6], 64, 64, 4
    $region9: #{_forward_impl.1} parent=1 // pred_fallthru
      _
    // Predicated region
    $region10: #{_forward_impl.1} parent=1 // pred_check
      _
    $region11: #{_forward_impl.1} parent=1 // pred_check_branch
      %40 = sbr.rel (0) target = $region13
    $region12: #{_forward_impl.1} parent=1 // pred_region
      %s42 = ssub.s32 16, 16
      %43 = vsyncadd [#allocation6], %s42
      %s45 = sshll.u32 [#allocation7], 4
      %s46 = int_to_ptr.vmem [resolvable:$true] %s45
      %48 = dma.hbm_to_vmem [thread:$0]  %s2, 16, %s46, [#allocation6]
    $region13: #{_forward_impl.1} parent=1 // pred_fallthru
      _
    // Predicated region
    $region14: #{_forward_impl.1} parent=1 // pred_check
      _
    $region15: #{_forward_impl.1} parent=1 // pred_check_branch
      %50 = sbr.rel (0) target = $region17
    $region16: #{_forward_impl.1} parent=1 // pred_region
      %s52 = ssub.s32 1024, 1024
      %53 = vsyncadd [#allocation9], %s52
      %s54 = sshll.u32 [#allocation8], 4
      %s55 = int_to_ptr.vmem [resolvable:$true] %s54
      %60 = dma.hbm_to_vmem [thread:$0]  %s3, 1024, %s55, [#allocation9], 64, 64, 4
    $region17: #{_forward_impl.1} parent=1 // pred_fallthru
      _
    // Predicated region
    $region18: #{_forward_impl.1} parent=1 // pred_check
      _
    $region19: #{_forward_impl.1} parent=1 // pred_check_branch
      %62 = sbr.rel (0) target = $region21
    $region20: #{_forward_impl.1} parent=1 // pred_region
      %s64 = ssub.s32 16, 16
      %65 = vsyncadd [#allocation9], %s64
      %s67 = sshll.u32 [#allocation10], 4
      %s68 = int_to_ptr.vmem [resolvable:$true] %s67
      %70 = dma.hbm_to_vmem [thread:$0]  %s4, 16, %s68, [#allocation9]
    $region21: #{_forward_impl.1} parent=1 // pred_fallthru
      _
    // Predicated region
    $region22: #{_forward_impl.1} parent=1 // pred_check
      _
    $region23: #{_forward_impl.1} parent=1 // pred_check_branch
      %72 = sbr.rel (0) target = $region25
    $region24: #{_forward_impl.1} parent=1 // pred_region
      %s74 = ssub.s32 1024, 1024
      %75 = vsyncadd [#allocation12], %s74
      %s76 = sshll.u32 [#allocation11], 4
      %s77 = int_to_ptr.vmem [resolvable:$true] %s76
      %82 = dma.hbm_to_vmem [thread:$0]  %s5, 1024, %s77, [#allocation12], 64, 64, 4
    $region25: #{_forward_impl.1} parent=1 // pred_fallthru
      _
    // Predicated region
    $region26: #{_forward_impl.1} parent=1 // pred_check
      _
    $region27: #{_forward_impl.1} parent=1 // pred_check_branch
      %84 = sbr.rel (0) target = $region29
    $region28: #{_forward_impl.1} parent=1 // pred_region
      %s86 = ssub.s32 16, 16
      %87 = vsyncadd [#allocation12], %s86
      %s89 = sshll.u32 [#allocation13], 4
      %s90 = int_to_ptr.vmem [resolvable:$true] %s89
      %92 = dma.hbm_to_vmem [thread:$0]  %s6, 16, %s90, [#allocation12]
    $region29: #{_forward_impl.1} parent=1 // pred_fallthru
      _
    // Predicated region
    $region30: #{_forward_impl.1} parent=1 // pred_check
      _
    $region31: #{_forward_impl.1} parent=1 // pred_check_branch
      %94 = sbr.rel (0) target = $region33
    $region32: #{_forward_impl.1} parent=1 // pred_region
      %95 = dma.done [#allocation3], 128
    $region33: #{_forward_impl.1} parent=1 // pred_fallthru
      _
    // Predicated region
    $region34: #{_forward_impl.1} parent=1 // pred_check
      _
    $region35: #{_forward_impl.1} parent=1 // pred_check_branch
      %97 = sbr.rel (0) target = $region37
    $region36: #{_forward_impl.1} parent=1 // pred_region
      %98 = dma.done [#allocation6], 256
    $region37: #{_forward_impl.1} parent=1 // pred_fallthru
      _
    // Predicated region
    $region38: #{_forward_impl.1} parent=1 // pred_check
      _
    $region39: #{_forward_impl.1} parent=1 // pred_check_branch
      %100 = sbr.rel (0) target = $region41
    $region40: #{_forward_impl.1} parent=1 // pred_region
      %101 = dma.done [#allocation6], 16
    $region41: #{_forward_impl.1} parent=1 // pred_fallthru
      _
    // Predicated region
    $region42: #{_forward_impl.1} parent=1 // pred_check
      _
    $region43: #{_forward_impl.1} parent=1 // pred_check_branch
      %103 = sbr.rel (0) target = $region45
    $region44: #{_forward_impl.1} parent=1 // pred_region
      %104 = dma.done [#allocation9], 1024
    $region45: #{_forward_impl.1} parent=1 // pred_fallthru
      _
    // Predicated region
    $region46: #{_forward_impl.1} parent=1 // pred_check
      _
    $region47: #{_forward_impl.1} parent=1 // pred_check_branch
      %106 = sbr.rel (0) target = $region49
    $region48: #{_forward_impl.1} parent=1 // pred_region
      %107 = dma.done [#allocation9], 16
    $region49: #{_forward_impl.1} parent=1 // pred_fallthru
      _
    // Predicated region
    $region50: #{_forward_impl.1} parent=1 // pred_check
      _
    $region51: #{_forward_impl.1} parent=1 // pred_check_branch
      %109 = sbr.rel (0) target = $region53
    $region52: #{_forward_impl.1} parent=1 // pred_region
      %110 = dma.done [#allocation12], 1024
    $region53: #{_forward_impl.1} parent=1 // pred_fallthru
      _
    // Predicated region
    $region54: #{_forward_impl.1} parent=1 // pred_check
      _
    $region55: #{_forward_impl.1} parent=1 // pred_check_branch
      %112 = sbr.rel (0) target = $region57
    $region56: #{_forward_impl.1} parent=1 // pred_region
      %113 = dma.done [#allocation12], 16
    $region57: #{_forward_impl.1} parent=1 // pred_fallthru
      _
    %v115 = vld [vmem:[#allocation2] sm:$0xff]
    %v116 = vpack.c.bf16 %v115, %v115
    %v117 = vld [vmem:[#allocation5] sm:$0xf]
    %v118 = vld [vmem:[#allocation5 + $0x4] sm:$0xf]
    %v119 = vld [vmem:[#allocation5 + $0x8] sm:$0xf]
    %v120 = vld [vmem:[#allocation5 + $0xc] sm:$0xf]
    %v121 = vld [vmem:[#allocation7] sm:$0x1]
    %v123 = vlaneseq
    %v124 = vshrl.u32 %v123, 7
    %v125 = vsub.s32 0, %v124
    %v126 = vrot.slane %v121, %v125
    %v132 = vunpack.c.l.b16 %v117
    %v133 = vunpack.c.l.b16 %v118
    %v134 = vunpack.c.l.b16 %v119
    %v135 = vunpack.c.l.b16 %v120
    %v136 = vpack.c.b16 %v133, %v132
    %v137 = vpack.c.b16 %v135, %v134
    %vm140 = vcmask 261120
    %v142 = vsel %vm140, %v116, 0
    %144 = vmatprep.subr.bf16.mxu0 0
    %145 = vmatpush1.bf16.msra.mxu0 %v136
    %146 = vmatprep.subr.bf16.mxu0 0
    %147 = vmatpush1.bf16.msra.mxu0 %v137
    %148 = vmatprep.subr.bf16.mxu0 0
    %149 = vmatpush1.bf16.msra.mxu0 0
    %150 = vmatprep.subr.bf16.mxu0 0
    %151 = vmatpush1.bf16.msra.mxu0 0
    %152 = vmatprep.subr.bf16.mxu0 0
    %153 = vmatpush1.bf16.msra.mxu0 0
    %154 = vmatprep.subr.bf16.mxu0 0
    %155 = vmatpush1.bf16.msra.mxu0 0
    %156 = vmatprep.subr.bf16.mxu0 0
    %157 = vmatpush1.bf16.msra.mxu0 0
    %158 = vmatprep.subr.bf16.mxu0 0
    %159 = vmatpush1.bf16.msra.mxu0 0
    %160 = vmatprep.subr.bf16.mxu0 0
    %161 = vmatpush1.bf16.msra.mxu0 0
    %162 = vmatprep.subr.bf16.mxu0 0
    %163 = vmatpush1.bf16.msra.mxu0 0
    %164 = vmatprep.subr.bf16.mxu0 0
    %165 = vmatpush1.bf16.msra.mxu0 0
    %166 = vmatprep.subr.bf16.mxu0 0
    %167 = vmatpush1.bf16.msra.mxu0 0
    %168 = vmatprep.subr.bf16.mxu0 0
    %169 = vmatpush1.bf16.msra.mxu0 0
    %170 = vmatprep.subr.bf16.mxu0 0
    %171 = vmatpush1.bf16.msra.mxu0 0
    %172 = vmatprep.subr.bf16.mxu0 0
    %173 = vmatpush1.bf16.msra.mxu0 0
    %174 = vmatprep.subr.bf16.mxu0 0
    %175 = vmatpush1.bf16.msra.mxu0 0
    %176 = vmatprep.mubr.bf16.mxu0 0
    %177 = vmatmul.mubr.bf16.gmra.mrb[0].mxu0 %v142
    %v178 = vpop.f32.mrb[0].mxu0
    %v179 = vadd.f32 %v126, %v178
    %v180 = vpop.f32.mrb[0].mxu0
    %v181 = vpop.f32.mrb[0].mxu0
    %v182 = vpop.f32.mrb[0].mxu0
    %183 = vdwg.mxu0
    %v184 = vmax.f32 %v179, 0.0
    %v185 = vpack.c.bf16 %v184, %v184
    %v186 = vld [vmem:[#allocation8] sm:$0xf]
    %v187 = vld [vmem:[#allocation8 + $0x4] sm:$0xf]
    %v188 = vld [vmem:[#allocation8 + $0x8] sm:$0xf]
    %v189 = vld [vmem:[#allocation8 + $0xc] sm:$0xf]
    %v190 = vld [vmem:[#allocation8 + $0x10] sm:$0xf]
    %v191 = vld [vmem:[#allocation8 + $0x14] sm:$0xf]
    %v192 = vld [vmem:[#allocation8 + $0x18] sm:$0xf]
    %v193 = vld [vmem:[#allocation8 + $0x1c] sm:$0xf]
    %v194 = vld [vmem:[#allocation8 + $0x20] sm:$0xf]
    %v195 = vld [vmem:[#allocation8 + $0x24] sm:$0xf]
    %v196 = vld [vmem:[#allocation8 + $0x28] sm:$0xf]
    %v197 = vld [vmem:[#allocation8 + $0x2c] sm:$0xf]
    %v198 = vld [vmem:[#allocation8 + $0x30] sm:$0xf]
    %v199 = vld [vmem:[#allocation8 + $0x34] sm:$0xf]
    %v200 = vld [vmem:[#allocation8 + $0x38] sm:$0xf]
    %v201 = vld [vmem:[#allocation8 + $0x3c] sm:$0xf]
    %v202 = vld [vmem:[#allocation10] sm:$0x1]
    %v204 = vlaneseq
    %v205 = vshrl.u32 %v204, 7
    %v206 = vsub.s32 0, %v205
    %v207 = vrot.slane %v202, %v206
    %v225 = vunpack.c.l.b16 %v186
    %v226 = vunpack.c.l.b16 %v187
    %v227 = vunpack.c.l.b16 %v188
    %v228 = vunpack.c.l.b16 %v189
    %v229 = vunpack.c.l.b16 %v190
    %v230 = vunpack.c.l.b16 %v191
    %v231 = vunpack.c.l.b16 %v192
    %v232 = vunpack.c.l.b16 %v193
    %v233 = vunpack.c.l.b16 %v194
    %v234 = vunpack.c.l.b16 %v195
    %v235 = vunpack.c.l.b16 %v196
    %v236 = vunpack.c.l.b16 %v197
    %v237 = vunpack.c.l.b16 %v198
    %v238 = vunpack.c.l.b16 %v199
    %v239 = vunpack.c.l.b16 %v200
    %v240 = vunpack.c.l.b16 %v201
    %v241 = vpack.c.b16 %v226, %v225
    %v242 = vpack.c.b16 %v228, %v227
    %v243 = vpack.c.b16 %v230, %v229
    %v244 = vpack.c.b16 %v232, %v231
    %v245 = vpack.c.b16 %v234, %v233
    %v246 = vpack.c.b16 %v236, %v235
    %v247 = vpack.c.b16 %v238, %v237
    %v248 = vpack.c.b16 %v240, %v239
    %257 = vmatprep.subr.bf16.mxu0 0
    %258 = vmatpush1.bf16.msra.mxu0 %v241
    %259 = vmatprep.subr.bf16.mxu0 0
    %260 = vmatpush1.bf16.msra.mxu0 %v242
    %261 = vmatprep.subr.bf16.mxu0 0
    %262 = vmatpush1.bf16.msra.mxu0 %v243
    %263 = vmatprep.subr.bf16.mxu0 0
    %264 = vmatpush1.bf16.msra.mxu0 %v244
    %265 = vmatprep.subr.bf16.mxu0 0
    %266 = vmatpush1.bf16.msra.mxu0 %v245
    %267 = vmatprep.subr.bf16.mxu0 0
    %268 = vmatpush1.bf16.msra.mxu0 %v246
    %269 = vmatprep.subr.bf16.mxu0 0
    %270 = vmatpush1.bf16.msra.mxu0 %v247
    %271 = vmatprep.subr.bf16.mxu0 0
    %272 = vmatpush1.bf16.msra.mxu0 %v248
    %273 = vmatprep.subr.bf16.mxu0 0
    %274 = vmatpush1.bf16.msra.mxu0 0
    %275 = vmatprep.subr.bf16.mxu0 0
    %276 = vmatpush1.bf16.msra.mxu0 0
    %277 = vmatprep.subr.bf16.mxu0 0
    %278 = vmatpush1.bf16.msra.mxu0 0
    %279 = vmatprep.subr.bf16.mxu0 0
    %280 = vmatpush1.bf16.msra.mxu0 0
    %281 = vmatprep.subr.bf16.mxu0 0
    %282 = vmatpush1.bf16.msra.mxu0 0
    %283 = vmatprep.subr.bf16.mxu0 0
    %284 = vmatpush1.bf16.msra.mxu0 0
    %285 = vmatprep.subr.bf16.mxu0 0
    %286 = vmatpush1.bf16.msra.mxu0 0
    %287 = vmatprep.subr.bf16.mxu0 0
    %288 = vmatpush1.bf16.msra.mxu0 0
    %289 = vmatprep.mubr.bf16.mxu0 0
    %290 = vmatmul.mubr.bf16.gmra.mrb[0].mxu0 %v185
    %v291 = vpop.f32.mrb[0].mxu0
    %v292 = vadd.f32 %v207, %v291
    %v293 = vpop.f32.mrb[0].mxu0
    %v294 = vpop.f32.mrb[0].mxu0
    %v295 = vpop.f32.mrb[0].mxu0
    %296 = vdwg.mxu0
    %v297 = vmax.f32 %v292, 0.0
    %v298 = vpack.c.bf16 %v297, %v297
    %v299 = vld [vmem:[#allocation11] sm:$0xf]
    %v300 = vld [vmem:[#allocation11 + $0x4] sm:$0xf]
    %v301 = vld [vmem:[#allocation11 + $0x8] sm:$0xf]
    %v302 = vld [vmem:[#allocation11 + $0xc] sm:$0xf]
    %v303 = vld [vmem:[#allocation11 + $0x10] sm:$0xf]
    %v304 = vld [vmem:[#allocation11 + $0x14] sm:$0xf]
    %v305 = vld [vmem:[#allocation11 + $0x18] sm:$0xf]
    %v306 = vld [vmem:[#allocation11 + $0x1c] sm:$0xf]
    %v307 = vld [vmem:[#allocation11 + $0x20] sm:$0xf]
    %v308 = vld [vmem:[#allocation11 + $0x24] sm:$0xf]
    %v309 = vld [vmem:[#allocation11 + $0x28] sm:$0xf]
    %v310 = vld [vmem:[#allocation11 + $0x2c] sm:$0xf]
    %v311 = vld [vmem:[#allocation11 + $0x30] sm:$0xf]
    %v312 = vld [vmem:[#allocation11 + $0x34] sm:$0xf]
    %v313 = vld [vmem:[#allocation11 + $0x38] sm:$0xf]
    %v314 = vld [vmem:[#allocation11 + $0x3c] sm:$0xf]
    %v315 = vld [vmem:[#allocation13] sm:$0x1]
    %v317 = vlaneseq
    %v318 = vshrl.u32 %v317, 7
    %v319 = vsub.s32 0, %v318
    %v320 = vrot.slane %v315, %v319
    %v338 = vunpack.c.l.b16 %v299
    %v339 = vunpack.c.l.b16 %v300
    %v340 = vunpack.c.l.b16 %v301
    %v341 = vunpack.c.l.b16 %v302
    %v342 = vunpack.c.l.b16 %v303
    %v343 = vunpack.c.l.b16 %v304
    %v344 = vunpack.c.l.b16 %v305
    %v345 = vunpack.c.l.b16 %v306
    %v346 = vunpack.c.l.b16 %v307
    %v347 = vunpack.c.l.b16 %v308
    %v348 = vunpack.c.l.b16 %v309
    %v349 = vunpack.c.l.b16 %v310
    %v350 = vunpack.c.l.b16 %v311
    %v351 = vunpack.c.l.b16 %v312
    %v352 = vunpack.c.l.b16 %v313
    %v353 = vunpack.c.l.b16 %v314
    %v354 = vpack.c.b16 %v339, %v338
    %v355 = vpack.c.b16 %v341, %v340
    %v356 = vpack.c.b16 %v343, %v342
    %v357 = vpack.c.b16 %v345, %v344
    %v358 = vpack.c.b16 %v347, %v346
    %v359 = vpack.c.b16 %v349, %v348
    %v360 = vpack.c.b16 %v351, %v350
    %v361 = vpack.c.b16 %v353, %v352
    %370 = vmatprep.subr.bf16.mxu0 0
    %371 = vmatpush1.bf16.msra.mxu0 %v354
    %372 = vmatprep.subr.bf16.mxu0 0
    %373 = vmatpush1.bf16.msra.mxu0 %v355
    %374 = vmatprep.subr.bf16.mxu0 0
    %375 = vmatpush1.bf16.msra.mxu0 %v356
    %376 = vmatprep.subr.bf16.mxu0 0
    %377 = vmatpush1.bf16.msra.mxu0 %v357
    %378 = vmatprep.subr.bf16.mxu0 0
    %379 = vmatpush1.bf16.msra.mxu0 %v358
    %380 = vmatprep.subr.bf16.mxu0 0
    %381 = vmatpush1.bf16.msra.mxu0 %v359
    %382 = vmatprep.subr.bf16.mxu0 0
    %383 = vmatpush1.bf16.msra.mxu0 %v360
    %384 = vmatprep.subr.bf16.mxu0 0
    %385 = vmatpush1.bf16.msra.mxu0 %v361
    %386 = vmatprep.subr.bf16.mxu0 0
    %387 = vmatpush1.bf16.msra.mxu0 0
    %388 = vmatprep.subr.bf16.mxu0 0
    %389 = vmatpush1.bf16.msra.mxu0 0
    %390 = vmatprep.subr.bf16.mxu0 0
    %391 = vmatpush1.bf16.msra.mxu0 0
    %392 = vmatprep.subr.bf16.mxu0 0
    %393 = vmatpush1.bf16.msra.mxu0 0
    %394 = vmatprep.subr.bf16.mxu0 0
    %395 = vmatpush1.bf16.msra.mxu0 0
    %396 = vmatprep.subr.bf16.mxu0 0
    %397 = vmatpush1.bf16.msra.mxu0 0
    %398 = vmatprep.subr.bf16.mxu0 0
    %399 = vmatpush1.bf16.msra.mxu0 0
    %400 = vmatprep.subr.bf16.mxu0 0
    %401 = vmatpush1.bf16.msra.mxu0 0
    %402 = vmatprep.mubr.bf16.mxu0 0
    %403 = vmatmul.mubr.bf16.gmra.mrb[0].mxu0 %v298
    %v404 = vpop.f32.mrb[0].mxu0
    %v405 = vadd.f32 %v320, %v404
    %v406 = vpop.f32.mrb[0].mxu0
    %v407 = vpop.f32.mrb[0].mxu0
    %v408 = vpop.f32.mrb[0].mxu0
    %409 = vdwg.mxu0
    %410 = vst [vmem:[#allocation14] sm:$0xff] %v405
    // Predicated region
    $region58: #{_forward_impl.1} parent=1 // pred_check
      _
    $region59: #{_forward_impl.1} parent=1 // pred_check_branch
      %412 = sbr.rel (0) target = $region61
    $region60: #{_forward_impl.1} parent=1 // pred_region
      %s414 = ssub.s32 128, 128
      %415 = vsyncadd [#allocation4], %s414
      %s417 = sshll.u32 [#allocation14], 4
      %s418 = int_to_ptr.vmem [resolvable:$true] %s417
      %420 = dma.vmem_to_hbm [thread:$0]  %s418, 128, %s7, [#allocation4]
    $region61: #{_forward_impl.1} parent=1 // pred_fallthru
      _
    // Predicated region
    $region62: #{_forward_impl.1} parent=1 // pred_check
      _
    $region63: #{_forward_impl.1} parent=1 // pred_check_branch
      %422 = sbr.rel (0) target = $region65
    $region64: #{_forward_impl.1} parent=1 // pred_region
      %423 = dma.done [#allocation4], 128
    $region65: #{_forward_impl.1} parent=1 // pred_fallthru
      _
    %424 = vsyncpa [#allocation3], 1
    %425 = vsyncpa [#allocation6], 1
    %426 = vsyncpa [#allocation9], 1
    %427 = vsyncpa [#allocation12], 1
    %428 = vsyncpa [#allocation4], 1

</llo_original>
